<compile_context>
chip_gen: v6e
topology: v6e:2x2x1
jax: 0.10.0
libtpu: 0.0.40
codegen_flags: <defaults>
</compile_context>

<pallas_src>
import jax
import jax.numpy as jnp
from jax.experimental import pallas as pl
from jax.experimental.pallas import tpu as pltpu


# ----------------------------- kernel ---------------------------------------

def _fagcn_kernel(t_ref, b_ref, x_ref, o_ref):
    # t_ref: (TR, CVp)  bf16  fused propagation+mix matrix (row tile)
    # b_ref: (TR, 1)    f32   bias rows
    # x_ref: (CVp, TL)  bf16  lane-dense input slab tile (lanes = flattened N*L)
    # o_ref: (TR, TL)   f32   output tile
    y = jnp.dot(t_ref[...], x_ref[...], preferred_element_type=jnp.float32)
    o_ref[...] = (y + b_ref[...]).astype(o_ref.dtype)


# ----------------------------- helpers ---------------------------------------

def _round_up(x, m):
    return ((x + m - 1) // m) * m


def _vmem_capacity_bytes():
    """Per-core VMEM capacity; conservative fallback = 64 MiB (v7x per-TC)."""
    try:
        cap = int(pltpu.get_tpu_info().vmem_capacity_bytes)
        return max(cap, 48 << 20)
    except Exception:
        return 64 << 20


def _choose_tiles(CVp, NL, budget, t_bytes, x_bytes, o_bytes=4):
    """Pick (TR, TL): T row-tile and lane tile (multiples of 128) such that the
    double-buffered working set stays inside `budget`."""
    def need(tr, tl):
        return (2 * tr * CVp * t_bytes      # T tile   (double-buffered)
                + 2 * CVp * tl * x_bytes    # X tile   (double-buffered)
                + 2 * tr * tl * o_bytes     # out tile (double-buffered)
                + 2 * tr * 4)               # bias
    tl_cap = max(128, _round_up(NL, 128))
    tl_opts = [t for t in (512, 256, 128) if t <= tl_cap] or [128]
    tr_opts = [CVp] + [t for t in (512, 256, 128) if t < CVp and CVp % t == 0]
    for tr in tr_opts:            # prefer keeping T fully resident ...
        for tl in tl_opts:        # ... with the largest lane tile that fits
            if need(tr, tl) <= budget:
                return tr, tl, need(tr, tl)
    return 128, 128, need(128, 128)


def _stacked_supports(adj, eps, order):
    """[A_L, A_L^2, ..., A_H, A_H^2, ...] in the reference concat order."""
    V = adj.shape[0]
    eye = jnp.eye(V, dtype=adj.dtype)
    mats = []
    for a in (eps * eye + adj, eps * eye - adj):
        p = a
        mats.append(p)
        for _ in range(2, order + 1):
            p = p @ a
            mats.append(p)
    return jnp.stack(mats, axis=0)                      # (2*order, V, V)


# ----------------------------- wrapper ----------------------------------------

def fagcn_forward(x, adj, w, b, eps, order=2, compute_dtype=jnp.bfloat16):
    """x: (N, C, V, L), adj: (V, V), w: (C, 2*order*C, 1, 1), b: (C,)."""
    N, C, V, Lt = x.shape
    K = 2 * order
    CV = C * V
    NL = N * Lt

    # ---- one-time XLA-side precompute (tiny: K (V,V) matmuls + one einsum) ----
    S = _stacked_supports(adj.astype(jnp.float32), jnp.float32(eps), order)
    Wk = w.reshape(C, K, C).astype(jnp.float32)         # W[o, k*C + c] -> [o,k,c]
    # T[o, w, c, v] = sum_k Wk[o,k,c] * S[k,v,w]
    T = jnp.einsum('okc,kvw->owcv', Wk, S).reshape(CV, CV)

    # ---- padding / tiling (MXU- and vreg-friendly, VMEM-budget aware) ----
    t_bytes = jnp.dtype(compute_dtype).itemsize
    x_bytes = jnp.dtype(compute_dtype).itemsize
    CVp = _round_up(CV, 128)
    cap = _vmem_capacity_bytes()
    budget = min(max(cap // 3, 16 << 20), 32 << 20)
    TR, TL, working = _choose_tiles(CVp, NL, budget, t_bytes, x_bytes)
    Mp = _round_up(NL, TL)
    n_row = CVp // TR
    n_col = Mp // TL
    vmem_limit = int(min(cap - (4 << 20), max(2 * working, 32 << 20)))

    # Fused matrix / bias, zero-padded and cast to the compute dtype.
    T_p = jnp.zeros((CVp, CVp), jnp.float32).at[:CV, :CV].set(T)
    T_p = T_p.astype(compute_dtype)
    b_p = jnp.zeros((CVp, 1), jnp.float32).at[:CV, 0].set(
        jnp.repeat(b.astype(jnp.float32), V))           # bias[o*V+w] = b[o]

    # Lane-dense slab: (N, C, V, L) -> (C*V, N*L), zero-padded on both axes.
    x2d = jnp.transpose(x.reshape(N, CV, Lt), (1, 0, 2)).reshape(CV, NL)
    x2d = jnp.zeros((CVp, Mp), compute_dtype).at[:CV, :NL].set(
        x2d.astype(compute_dtype))

    out = pl.pallas_call(
        _fagcn_kernel,
        out_shape=jax.ShapeDtypeStruct((CVp, Mp), jnp.float32),
        grid_spec=pltpu.PrefetchScalarGridSpec(
            num_scalar_prefetch=0,
            # column (lane) axis outer, T-row axis inner: the X tile stays
            # resident while T row-tiles stream -> X HBM traffic is read-once.
            grid=(n_col, n_row),
            in_specs=[
                pl.BlockSpec((TR, CVp), lambda c, r: (r, 0)),   # T row tile
                pl.BlockSpec((TR, 1), lambda c, r: (r, 0)),     # bias rows
                pl.BlockSpec((CVp, TL), lambda c, r: (0, c)),   # X lane tile
            ],
            out_specs=pl.BlockSpec((TR, TL), lambda c, r: (r, c)),
        ),
        compiler_params=pltpu.CompilerParams(
            dimension_semantics=("parallel", "parallel"),
            vmem_limit_bytes=vmem_limit),
    )(T_p, b_p, x2d)

    # Un-pad and restore the native (N, C, V, L) layout.
    y = out[:CV, :NL].reshape(CV, N, Lt)
    y = jnp.transpose(y, (1, 0, 2)).reshape(N, C, V, Lt)
    return y.astype(x.dtype)


# ----------------------------- pure-JAX reference -----------------------------

def fagcn_reference(x, adj, w, b, eps, order=2):
    """Matches the PyTorch forward (eval mode), f32 throughout."""
    V = adj.shape[0]
    eye = jnp.eye(V, dtype=x.dtype)
    supports = [eps * eye + adj, eps * eye - adj]
    out = []
    for a in supports:
        x1 = jnp.einsum('ncvl,vw->ncwl', x, a)
        out.append(x1)
        for _k in range(2, order + 1):
            x2 = jnp.einsum('ncvl,vw->ncwl', x1, a)
            out.append(x2)
            x1 = x2
    h = jnp.concatenate(out, axis=1)
    y = jnp.einsum('oi,nivl->novl', w[:, :, 0, 0], h)
    return y + b[None, :, None, None]


if __name__ == "__main__":
    # Small deterministic example consistent with the module:
    # batch=2, input_dim=4, num_nodes=16, seq_len=16, order=2, eps=0.3.
    N, C, V, Lt = 2, 4, 16, 16
    order = 2
    eps = 0.3
    c_in = 2 * order * C

    key = jax.random.PRNGKey(0)
    kx, kadj, kw, kb = jax.random.split(key, 4)
    x = jax.random.normal(kx, (N, C, V, Lt), dtype=jnp.float32)
    adj = jax.random.uniform(kadj, (V, V), dtype=jnp.float32)
    adj = adj / jnp.sum(adj, axis=1, keepdims=True)      # row-normalized adjacency
    # Conv2d(c_in, c_out, kernel_size=(1,1), bias=True) parameters.
    w = 0.1 * jax.random.normal(kw, (C, c_in, 1, 1), dtype=jnp.float32)
    b = 0.1 * jax.random.normal(kb, (C,), dtype=jnp.float32)

    y = jax.block_until_ready(fagcn_forward(x, adj, w, b, eps, order=order))
    y_ref = fagcn_reference(x, adj, w, b, eps, order=order)

    assert y.shape == (N, C, V, Lt), y.shape
    max_err = float(jnp.max(jnp.abs(y - y_ref)))
    # bf16 inputs with f32 accumulation -> relaxed tolerance vs. the f32 reference.
    assert jnp.allclose(y, y_ref, atol=2e-2, rtol=2e-2), max_err
    print("KERNEL_OK")
</pallas_src>

<mosaic_0001>
module attributes {stable_mosaic.version = 11 : i64} {
  func.func @_fagcn_kernel(%arg0: i32, %arg1: i32, %arg2: memref<128x128xbf16, #tpu.memory_space<vmem>>, %arg3: memref<128x1xf32, #tpu.memory_space<vmem>>, %arg4: memref<128x128xbf16, #tpu.memory_space<vmem>>, %arg5: memref<128x128xf32, #tpu.memory_space<vmem>>) attributes {dimension_semantics = [#tpu.dimension_semantics<parallel>, #tpu.dimension_semantics<parallel>], iteration_bounds = array<i64: 1, 1>, scalar_prefetch = 0 : i64, scratch_operands = 0 : i64, tpu.core_type = #tpu.core_type<tc>, window_params = [{transform_indices = @transform_0, window_bounds = array<i64: 128, 128>}, {transform_indices = @transform_1, window_bounds = array<i64: 128, 1>}, {transform_indices = @transform_2, window_bounds = array<i64: 128, 128>}, {transform_indices = @transform_3, window_bounds = array<i64: 128, 128>}]} {
    %c0 = arith.constant 0 : index
    %c0_0 = arith.constant 0 : index
    %0 = vector.load %arg2[%c0, %c0_0] : memref<128x128xbf16, #tpu.memory_space<vmem>>, vector<128x128xbf16>
    %c0_1 = arith.constant 0 : index
    %c0_2 = arith.constant 0 : index
    %1 = vector.load %arg4[%c0_1, %c0_2] : memref<128x128xbf16, #tpu.memory_space<vmem>>, vector<128x128xbf16>
    %cst = arith.constant dense<0.000000e+00> : vector<128x128xf32>
    %2 = tpu.matmul %0, %1, %cst {dimension_numbers = #tpu.dot_dimension_numbers<[1], [0], [0], [1], [0, 0, 1, 1], [], []>} : vector<128x128xbf16>, vector<128x128xbf16>, vector<128x128xf32> -> vector<128x128xf32>
    %c0_3 = arith.constant 0 : index
    %c0_4 = arith.constant 0 : index
    %3 = vector.load %arg3[%c0_3, %c0_4] : memref<128x1xf32, #tpu.memory_space<vmem>>, vector<128x1xf32>
    %4 = vector.broadcast %3 : vector<128x1xf32> to vector<128x128xf32>
    %5 = arith.addf %2, %4 : vector<128x128xf32>
    %c0_5 = arith.constant 0 : index
    %c0_6 = arith.constant 0 : index
    %6 = vector.load %arg5[%c0_5, %c0_6] : memref<128x128xf32, #tpu.memory_space<vmem>>, vector<128x128xf32>
    tpu.vector_store %arg5[%c0_5, %c0_6], %5 {strides = array<i32>} : memref<128x128xf32, #tpu.memory_space<vmem>>, vector<128x128xf32>,
    return
  }
  func.func @transform_0(%arg0: i32, %arg1: i32) -> (i32, i32) {
    %c0_i32 = arith.constant 0 : i32
    %c0_i32_0 = arith.constant 0 : i32
    return %arg1, %c0_i32 : i32, i32
  }
  func.func @transform_1(%arg0: i32, %arg1: i32) -> (i32, i32) {
    %c0_i32 = arith.constant 0 : i32
    %c0_i32_0 = arith.constant 0 : i32
    return %arg1, %c0_i32 : i32, i32
  }
  func.func @transform_2(%arg0: i32, %arg1: i32) -> (i32, i32) {
    %c0_i32 = arith.constant 0 : i32
    %c0_i32_0 = arith.constant 0 : i32
    return %c0_i32, %arg0 : i32, i32
  }
  func.func @transform_3(%arg0: i32, %arg1: i32) -> (i32, i32) {
    %c0_i32 = arith.constant 0 : i32
    return %arg1, %arg0 : i32, i32
  }
}

</mosaic_0001>

<llo_original>
// kernel: tpu_custom_call.1
$region0: #{tpu_custom_call.1}
  #allocation0 [shape = 'u32[]', space=smem, size = 0x4, offset = 0x4, fixed_abs, tag = 'smem constant byte address 0x4 - core index']
  #allocation1 [shape = 'u32[144,128]{1,0:T(1,128)}', space=vmem, size = 0x12000, scoped, tag = 'internal scratch']
  %s0 = inlined_call_operand.vmem [shape: bf16[128,128], index: 0, kind: input, shape index: {}]
  %s1 = inlined_call_operand.vmem [shape: f32[128,1], index: 1, kind: input, shape index: {}]
  %s2 = inlined_call_operand.vmem [shape: bf16[128,128], index: 2, kind: input, shape index: {}]
  %s3 = inlined_call_operand.hbm [shape: f32[128,128], index: 3, kind: output, shape index: {}]
  %s4 = sld [smem:[#allocation0]]
  $region22: #{tpu_custom_call.1} parent=0
    _
  %s6 = ssub.s32 1, %s4
  %s7 = scalar_select 0, %s6, %s4
  $region1: #{tpu_custom_call.1} parent=0
    #allocation2 [shape = 'u8[65536]{0}', space=vmem, size = 0x10000, scoped, tag = 'output window, operand 0, single buffered']
    #allocation3 [shape = 's32[1]{0}', space=sflag, size = 0x4, scoped, tag = 'scoped memory for tpu_custom_call.1']
    %8 = vsyncpa [#allocation3], 0
    // Predicated region
    $region2: #{tpu_custom_call.1} parent=1 // pred_check
      _
    $region3: #{tpu_custom_call.1} parent=1 // pred_check_branch
      %10 = sbr.rel (0) target = $region5
    $region4: #{tpu_custom_call.1} parent=1 // pred_region
      _
    $region5: #{tpu_custom_call.1} parent=1 // pred_fallthru
      _
    // Predicated region
    $region6: #{tpu_custom_call.1} parent=1 // pred_check
      _
    $region7: #{tpu_custom_call.1} parent=1 // pred_check_branch
      %12 = sbr.rel (0) target = $region9
    $region8: #{tpu_custom_call.1} parent=1 // pred_region
      _
    $region9: #{tpu_custom_call.1} parent=1 // pred_fallthru
      _
    // Predicated region
    $region10: #{tpu_custom_call.1} parent=1 // pred_check
      _
    $region11: #{tpu_custom_call.1} parent=1 // pred_check_branch
      %14 = sbr.rel (0) target = $region13
    $region12: #{tpu_custom_call.1} parent=1 // pred_region
      _
    $region13: #{tpu_custom_call.1} parent=1 // pred_fallthru
      _
    %v16 = vld [vmem:[%s0] sm:$0xf]
    %v17 = vld [vmem:[%s0 + $0x4] sm:$0xf]
    %v18 = vld [vmem:[%s0 + $0x8] sm:$0xf]
    %v19 = vld [vmem:[%s0 + $0xc] sm:$0xf]
    %v20 = vld [vmem:[%s0 + $0x10] sm:$0xf]
    %v21 = vld [vmem:[%s0 + $0x14] sm:$0xf]
    %v22 = vld [vmem:[%s0 + $0x18] sm:$0xf]
    %v23 = vld [vmem:[%s0 + $0x1c] sm:$0xf]
    %v24 = vld [vmem:[%s0 + $0x20] sm:$0xf]
    %v25 = vld [vmem:[%s0 + $0x24] sm:$0xf]
    %v26 = vld [vmem:[%s0 + $0x28] sm:$0xf]
    %v27 = vld [vmem:[%s0 + $0x2c] sm:$0xf]
    %v28 = vld [vmem:[%s0 + $0x30] sm:$0xf]
    %v29 = vld [vmem:[%s0 + $0x34] sm:$0xf]
    %v30 = vld [vmem:[%s0 + $0x38] sm:$0xf]
    %v31 = vld [vmem:[%s0 + $0x3c] sm:$0xf]
    %v32 = vld [vmem:[%s2] sm:$0xf]
    %v33 = vld [vmem:[%s2 + $0x4] sm:$0xf]
    %v34 = vld [vmem:[%s2 + $0x8] sm:$0xf]
    %v35 = vld [vmem:[%s2 + $0xc] sm:$0xf]
    %v36 = vld [vmem:[%s2 + $0x10] sm:$0xf]
    %v37 = vld [vmem:[%s2 + $0x14] sm:$0xf]
    %v38 = vld [vmem:[%s2 + $0x18] sm:$0xf]
    %v39 = vld [vmem:[%s2 + $0x1c] sm:$0xf]
    %v40 = vld [vmem:[%s2 + $0x20] sm:$0xf]
    %v41 = vld [vmem:[%s2 + $0x24] sm:$0xf]
    %v42 = vld [vmem:[%s2 + $0x28] sm:$0xf]
    %v43 = vld [vmem:[%s2 + $0x2c] sm:$0xf]
    %v44 = vld [vmem:[%s2 + $0x30] sm:$0xf]
    %v45 = vld [vmem:[%s2 + $0x34] sm:$0xf]
    %v46 = vld [vmem:[%s2 + $0x38] sm:$0xf]
    %v47 = vld [vmem:[%s2 + $0x3c] sm:$0xf]
    %v48 = vld [vmem:[%s1] sm:$0xff]
    %v49 = vld [vmem:[%s1 + $0x8] sm:$0xff]
    %v50 = vld [vmem:[%s1 + $0x10] sm:$0xff]
    %v51 = vld [vmem:[%s1 + $0x18] sm:$0xff]
    %v52 = vld [vmem:[%s1 + $0x20] sm:$0xff]
    %v53 = vld [vmem:[%s1 + $0x28] sm:$0xff]
    %v54 = vld [vmem:[%s1 + $0x30] sm:$0xff]
    %v55 = vld [vmem:[%s1 + $0x38] sm:$0xff]
    %v56 = vld [vmem:[%s1 + $0x40] sm:$0xff]
    %v57 = vld [vmem:[%s1 + $0x48] sm:$0xff]
    %v58 = vld [vmem:[%s1 + $0x50] sm:$0xff]
    %v59 = vld [vmem:[%s1 + $0x58] sm:$0xff]
    %v60 = vld [vmem:[%s1 + $0x60] sm:$0xff]
    %v61 = vld [vmem:[%s1 + $0x68] sm:$0xff]
    %v62 = vld [vmem:[%s1 + $0x70] sm:$0xff]
    %v63 = vld [vmem:[%s1 + $0x78] sm:$0xff]
    %65 = vset.pattern.permute.xlu0 0
    %66 = vperm.xlu0 %65, %v48
    %v67 = vpop.permute.xlu0 %66
    %70 = vset.pattern.permute.xlu0 0
    %71 = vperm.xlu0 %70, %v49
    %v72 = vpop.permute.xlu0 %71
    %75 = vset.pattern.permute.xlu0 0
    %76 = vperm.xlu0 %75, %v50
    %v77 = vpop.permute.xlu0 %76
    %80 = vset.pattern.permute.xlu0 0
    %81 = vperm.xlu0 %80, %v51
    %v82 = vpop.permute.xlu0 %81
    %85 = vset.pattern.permute.xlu0 0
    %86 = vperm.xlu0 %85, %v52
    %v87 = vpop.permute.xlu0 %86
    %90 = vset.pattern.permute.xlu0 0
    %91 = vperm.xlu0 %90, %v53
    %v92 = vpop.permute.xlu0 %91
    %95 = vset.pattern.permute.xlu0 0
    %96 = vperm.xlu0 %95, %v54
    %v97 = vpop.permute.xlu0 %96
    %100 = vset.pattern.permute.xlu0 0
    %101 = vperm.xlu0 %100, %v55
    %v102 = vpop.permute.xlu0 %101
    %105 = vset.pattern.permute.xlu0 0
    %106 = vperm.xlu0 %105, %v56
    %v107 = vpop.permute.xlu0 %106
    %110 = vset.pattern.permute.xlu0 0
    %111 = vperm.xlu0 %110, %v57
    %v112 = vpop.permute.xlu0 %111
    %115 = vset.pattern.permute.xlu0 0
    %116 = vperm.xlu0 %115, %v58
    %v117 = vpop.permute.xlu0 %116
    %120 = vset.pattern.permute.xlu0 0
    %121 = vperm.xlu0 %120, %v59
    %v122 = vpop.permute.xlu0 %121
    %125 = vset.pattern.permute.xlu0 0
    %126 = vperm.xlu0 %125, %v60
    %v127 = vpop.permute.xlu0 %126
    %130 = vset.pattern.permute.xlu0 0
    %131 = vperm.xlu0 %130, %v61
    %v132 = vpop.permute.xlu0 %131
    %135 = vset.pattern.permute.xlu0 0
    %136 = vperm.xlu0 %135, %v62
    %v137 = vpop.permute.xlu0 %136
    %140 = vset.pattern.permute.xlu0 0
    %141 = vperm.xlu0 %140, %v63
    %v142 = vpop.permute.xlu0 %141
    %v160 = vunpack.c.l.b16 %v16
    %v161 = vunpack.c.l.b16 %v17
    %v162 = vunpack.c.l.b16 %v18
    %v163 = vunpack.c.l.b16 %v19
    %v164 = vunpack.c.l.b16 %v20
    %v165 = vunpack.c.l.b16 %v21
    %v166 = vunpack.c.l.b16 %v22
    %v167 = vunpack.c.l.b16 %v23
    %v168 = vunpack.c.l.b16 %v24
    %v169 = vunpack.c.l.b16 %v25
    %v170 = vunpack.c.l.b16 %v26
    %v171 = vunpack.c.l.b16 %v27
    %v172 = vunpack.c.l.b16 %v28
    %v173 = vunpack.c.l.b16 %v29
    %v174 = vunpack.c.l.b16 %v30
    %v175 = vunpack.c.l.b16 %v31
    %v176 = vpack.c.b16 %v161, %v160
    %v177 = vpack.c.b16 %v163, %v162
    %v178 = vpack.c.b16 %v165, %v164
    %v179 = vpack.c.b16 %v167, %v166
    %v180 = vpack.c.b16 %v169, %v168
    %v181 = vpack.c.b16 %v171, %v170
    %v182 = vpack.c.b16 %v173, %v172
    %v183 = vpack.c.b16 %v175, %v174
    %v208 = vunpack.c.l.b16 %v32
    %v209 = vunpack.c.l.b16 %v33
    %v210 = vunpack.c.l.b16 %v34
    %v211 = vunpack.c.l.b16 %v35
    %v212 = vunpack.c.l.b16 %v36
    %v213 = vunpack.c.l.b16 %v37
    %v214 = vunpack.c.l.b16 %v38
    %v215 = vunpack.c.l.b16 %v39
    %v216 = vunpack.c.l.b16 %v40
    %v217 = vunpack.c.l.b16 %v41
    %v218 = vunpack.c.l.b16 %v42
    %v219 = vunpack.c.l.b16 %v43
    %v220 = vunpack.c.l.b16 %v44
    %v221 = vunpack.c.l.b16 %v45
    %v222 = vunpack.c.l.b16 %v46
    %v223 = vunpack.c.l.b16 %v47
    %v224 = vpack.c.b16 %v209, %v208
    %v225 = vpack.c.b16 %v211, %v210
    %v226 = vpack.c.b16 %v213, %v212
    %v227 = vpack.c.b16 %v215, %v214
    %v228 = vpack.c.b16 %v217, %v216
    %v229 = vpack.c.b16 %v219, %v218
    %v230 = vpack.c.b16 %v221, %v220
    %v231 = vpack.c.b16 %v223, %v222
    %240 = vmatprep.subr.bf16.mxu0 0
    %241 = vmatpush1.bf16.msra.mxu0 %v231
    %242 = vmatprep.subr.bf16.mxu0 0
    %243 = vmatpush1.bf16.msra.mxu0 %v230
    %244 = vmatprep.subr.bf16.mxu0 0
    %245 = vmatpush1.bf16.msra.mxu0 %v229
    %246 = vmatprep.subr.bf16.mxu0 0
    %247 = vmatpush1.bf16.msra.mxu0 %v228
    %248 = vmatprep.subr.bf16.mxu0 0
    %249 = vmatpush1.bf16.msra.mxu0 %v227
    %250 = vmatprep.subr.bf16.mxu0 0
    %251 = vmatpush1.bf16.msra.mxu0 %v226
    %252 = vmatprep.subr.bf16.mxu0 0
    %253 = vmatpush1.bf16.msra.mxu0 %v225
    %254 = vmatprep.subr.bf16.mxu0 0
    %255 = vmatpush1.bf16.msra.mxu0 %v224
    %256 = vmatprep.subr.bf16.mxu0 0
    %257 = vmatpush2.bf16.msra.mxu0 0
    %258 = vmatprep.subr.bf16.mxu0 0
    %259 = vmatpush2.bf16.msra.mxu0 0
    %260 = vmatprep.subr.bf16.mxu0 0
    %261 = vmatpush2.bf16.msra.mxu0 0
    %262 = vmatprep.subr.bf16.mxu0 0
    %263 = vmatpush2.bf16.msra.mxu0 0
    %264 = vmatprep.subr.bf16.mxu0 0
    %265 = vmatpush2.bf16.msra.mxu0 0
    %266 = vmatprep.subr.bf16.mxu0 0
    %267 = vmatpush2.bf16.msra.mxu0 0
    %268 = vmatprep.subr.bf16.mxu0 0
    %269 = vmatpush2.bf16.msra.mxu0 0
    %270 = vmatprep.subr.bf16.mxu0 0
    %271 = vmatpush2.bf16.msra.mxu0 0
    %272 = vmatprep.mubr.bf16.mxu0 0
    %273 = vmatmul.mubr.bf16.gmra.mxu0 %v176
    %v274 = vpop.f32.mrf.mxu0
    %v275 = vadd.f32 %v67, %v274
    %v276 = vpop.f32.mrf.mxu0
    %v277 = vpop.f32.mrf.mxu0
    %v278 = vadd.f32 %v72, %v277
    %v279 = vpop.f32.mrf.mxu0
    %280 = vmatprep.mubr.bf16.mxu0 0
    %281 = vmatmul.mubr.bf16.gmra.mxu0 %v177
    %v282 = vpop.f32.mrf.mxu0
    %v283 = vadd.f32 %v77, %v282
    %v284 = vpop.f32.mrf.mxu0
    %v285 = vpop.f32.mrf.mxu0
    %v286 = vadd.f32 %v82, %v285
    %v287 = vpop.f32.mrf.mxu0
    %288 = vmatprep.mubr.bf16.mxu0 0
    %289 = vmatmul.mubr.bf16.gmra.mxu0 %v178
    %v290 = vpop.f32.mrf.mxu0
    %v291 = vadd.f32 %v87, %v290
    %v292 = vpop.f32.mrf.mxu0
    %v293 = vpop.f32.mrf.mxu0
    %v294 = vadd.f32 %v92, %v293
    %v295 = vpop.f32.mrf.mxu0
    %296 = vmatprep.mubr.bf16.mxu0 0
    %297 = vmatmul.mubr.bf16.gmra.mxu0 %v179
    %v298 = vpop.f32.mrf.mxu0
    %v299 = vadd.f32 %v97, %v298
    %v300 = vpop.f32.mrf.mxu0
    %v301 = vpop.f32.mrf.mxu0
    %v302 = vadd.f32 %v102, %v301
    %v303 = vpop.f32.mrf.mxu0
    %304 = vmatprep.mubr.bf16.mxu0 0
    %305 = vmatmul.mubr.bf16.gmra.mxu0 %v180
    %v306 = vpop.f32.mrf.mxu0
    %v307 = vadd.f32 %v107, %v306
    %v308 = vpop.f32.mrf.mxu0
    %v309 = vpop.f32.mrf.mxu0
    %v310 = vadd.f32 %v112, %v309
    %v311 = vpop.f32.mrf.mxu0
    %312 = vmatprep.mubr.bf16.mxu0 0
    %313 = vmatmul.mubr.bf16.gmra.mxu0 %v181
    %v314 = vpop.f32.mrf.mxu0
    %v315 = vadd.f32 %v117, %v314
    %v316 = vpop.f32.mrf.mxu0
    %v317 = vpop.f32.mrf.mxu0
    %v318 = vadd.f32 %v122, %v317
    %v319 = vpop.f32.mrf.mxu0
    %320 = vmatprep.mubr.bf16.mxu0 0
    %321 = vmatmul.mubr.bf16.gmra.mxu0 %v182
    %v322 = vpop.f32.mrf.mxu0
    %v323 = vadd.f32 %v127, %v322
    %v324 = vpop.f32.mrf.mxu0
    %v325 = vpop.f32.mrf.mxu0
    %v326 = vadd.f32 %v132, %v325
    %v327 = vpop.f32.mrf.mxu0
    %328 = vmatprep.mubr.bf16.mxu0 0
    %329 = vmatmul.mubr.bf16.gmra.mxu0 %v183
    %v330 = vpop.f32.mrf.mxu0
    %v331 = vadd.f32 %v137, %v330
    %v332 = vpop.f32.mrf.mxu0
    %v333 = vpop.f32.mrf.mxu0
    %v334 = vadd.f32 %v142, %v333
    %v335 = vpop.f32.mrf.mxu0
    %336 = vdwg.mxu0
    %337 = vst [vmem:[#allocation2] sm:$0xff] %v275
    %338 = vst [vmem:[#allocation2 + $0x8] sm:$0xff] %v278
    %339 = vst [vmem:[#allocation2 + $0x10] sm:$0xff] %v283
    %340 = vst [vmem:[#allocation2 + $0x18] sm:$0xff] %v286
    %341 = vst [vmem:[#allocation2 + $0x20] sm:$0xff] %v291
    %342 = vst [vmem:[#allocation2 + $0x28] sm:$0xff] %v294
    %343 = vst [vmem:[#allocation2 + $0x30] sm:$0xff] %v299
    %344 = vst [vmem:[#allocation2 + $0x38] sm:$0xff] %v302
    %345 = vst [vmem:[#allocation2 + $0x40] sm:$0xff] %v307
    %346 = vst [vmem:[#allocation2 + $0x48] sm:$0xff] %v310
    %347 = vst [vmem:[#allocation2 + $0x50] sm:$0xff] %v315
    %348 = vst [vmem:[#allocation2 + $0x58] sm:$0xff] %v318
    %349 = vst [vmem:[#allocation2 + $0x60] sm:$0xff] %v323
    %350 = vst [vmem:[#allocation2 + $0x68] sm:$0xff] %v326
    %351 = vst [vmem:[#allocation2 + $0x70] sm:$0xff] %v331
    %352 = vst [vmem:[#allocation2 + $0x78] sm:$0xff] %v334
    // Predicated region
    $region14: #{tpu_custom_call.1} parent=1 // pred_check
      _
    $region15: #{tpu_custom_call.1} parent=1 // pred_check_branch
      %354 = sbr.rel (0) target = $region17
    $region16: #{tpu_custom_call.1} parent=1 // pred_region
      %s356 = ssub.s32 2048, 2048
      %357 = vsyncadd [#allocation3], %s356
      %s358 = sshll.u32 [#allocation2], 4
      %s359 = int_to_ptr.vmem [resolvable:$true] %s358
      %364 = dma.vmem_to_hbm [thread:$0]  %s359, 2048, %s3, [#allocation3], 128, 128, 8
    $region17: #{tpu_custom_call.1} parent=1 // pred_fallthru
      _
    // Predicated region
    $region18: #{tpu_custom_call.1} parent=1 // pred_check
      _
    $region19: #{tpu_custom_call.1} parent=1 // pred_check_branch
      %366 = sbr.rel (0) target = $region21
    $region20: #{tpu_custom_call.1} parent=1 // pred_region
      %367 = dma.done [#allocation3], 2048
    $region21: #{tpu_custom_call.1} parent=1 // pred_fallthru
      _
    %368 = vsyncpa [#allocation3], 1

</llo_original>
